<compile_context>
chip_gen: v5e
topology: v5e:2x2
jax: 0.10.0
libtpu: 0.0.40
codegen_flags: <defaults>
</compile_context>

<pallas_src>
import jax
import jax.numpy as jnp
from jax import lax
from jax.experimental import pallas as pl
from jax.experimental.pallas import tpu as pltpu


# ----------------------------- DDPM schedules ------------------------------
def ddpm_schedules(beta1, beta2, T):
    assert beta1 < beta2 < 1.0, "beta1 and beta2 must be in (0, 1)"
    beta_t = (beta2 - beta1) * jnp.arange(0, T + 1, dtype=jnp.float32) / T + beta1
    sqrt_beta_t = jnp.sqrt(beta_t)
    alpha_t = 1.0 - beta_t
    log_alpha_t = jnp.log(alpha_t)
    alphabar_t = jnp.exp(jnp.cumsum(log_alpha_t, axis=0))
    sqrtab = jnp.sqrt(alphabar_t)
    oneover_sqrta = 1.0 / jnp.sqrt(alpha_t)
    sqrtmab = jnp.sqrt(1.0 - alphabar_t)
    mab_over_sqrtmab_inv = (1.0 - alpha_t) / sqrtmab
    return {
        "alpha_t": alpha_t,
        "oneover_sqrta": oneover_sqrta,
        "sqrt_beta_t": sqrt_beta_t,
        "alphabar_t": alphabar_t,
        "sqrtab": sqrtab,
        "sqrtmab": sqrtmab,
        "mab_over_sqrtmab": mab_over_sqrtmab_inv,
    }


# ------------------------------ Pallas kernel -------------------------------
def ddpm_loss_kernel(x_ref,      # VMEM (TB, C, TP)   pixel tile of x
                     noise_ref,  # VMEM (TB, C, TP)   matching noise tile
                     sa_ref,     # VMEM (TB, 1, 1)    sqrtab[t_b]
                     sm_ref,     # VMEM (TB, 1, 1)    sqrtmab[t_b]
                     b1_ref,     # VMEM (TB, Hd, 1)   precomputed conditioning bias
                     w1_ref,     # VMEM (Hd, C)       first-layer weight (constant block)
                     w2_ref,     # VMEM (C, Hd)       second-layer weight (constant block)
                     b2_ref,     # VMEM (C, 1)        second-layer bias   (constant block)
                     sse_ref):   # VMEM (1, 1, 1, 1)  per-(batch-block, pixel-tile) partial SSE
    tb = x_ref.shape[0]
    tp = x_ref.shape[-1]

    w1 = w1_ref[...]
    w2 = w2_ref[...]
    b2 = b2_ref[...]

    def body(b, acc):
        x_b = x_ref[b]          # (C, TP)
        nz_b = noise_ref[b]     # (C, TP)
        # q-sample mix: per-batch (1,1) scales broadcast over (C, TP) — pure VPU.
        x_t = sa_ref[b] * x_b + sm_ref[b] * nz_b
        # stand-in nn_model: per-pixel MLP; conditioning folded into bias1.
        h = jnp.dot(w1, x_t, preferred_element_type=jnp.float32) + b1_ref[b]
        h = jnp.maximum(h, 0.0)
        eps = jnp.dot(w2, h, preferred_element_type=jnp.float32) + b2
        d = nz_b - eps
        # sublane-only reduce per iteration; lanes stay dense.
        return acc + jnp.sum(d * d, axis=0, keepdims=True)

    acc = lax.fori_loop(0, tb, body, jnp.zeros((1, tp), jnp.float32),
                        unroll=(tb <= 8))
    # One cross-lane collapse per (large) block; final tiny sum happens outside.
    sse_ref[...] = jnp.broadcast_to(jnp.sum(acc), (1, 1, 1, 1))


# ------------------------------ glue / wrapper ------------------------------
def _sample_randomness(key, x_shape, n_T, drop_prob):
    B = x_shape[0]
    k_t, k_noise, k_mask = jax.random.split(key, 3)
    _ts = jax.random.randint(k_t, (B,), 1, n_T + 1)                    # torch.randint(1, n_T+1)
    noise = jax.random.normal(k_noise, x_shape, dtype=jnp.float32)     # torch.randn_like(x)
    context_mask = jax.random.bernoulli(k_mask, drop_prob, (B,)).astype(jnp.float32)
    return _ts, noise, context_mask


def _padded_block_bytes(shape, itemsize=4):
    """VMEM footprint of one buffer of a block (last dim -> 128 lanes, 2nd-minor -> 8 sublanes)."""
    s = list(shape)
    s[-1] = -(-s[-1] // 128) * 128
    if len(s) >= 2:
        s[-2] = -(-s[-2] // 8) * 8
    n = itemsize
    for d in s:
        n *= d
    return n


def ddpm_forward_pallas(params, sched, x_nchw, c, key, n_T, drop_prob=0.1,
                        tb=None, tp=None):
    B, C, H, W = x_nchw.shape
    HW = H * W
    Hd = params["w1x"].shape[0]

    # Batch-block size: keep <=128 by default (v7x has half the VMEM of v6e and
    # needs >=2 parallel blocks to feed both TensorCores for realistic B).
    if tb is None:
        tb = min(B, 128)
        while B % tb:
            tb -= 1
    assert B % tb == 0, "batch must be divisible by the batch-block size"
    # Pixel-tile size: caps the (Hd, TP) hidden tile and double-buffered inputs.
    if tp is None:
        tp = min(HW, 2048)
        if HW % tp != 0:
            tp = HW
    assert HW % tp == 0, "spatial size must be divisible by the pixel-tile size"
    assert (tp % 128 == 0) or (tp == HW), \
        "pixel tile must be a multiple of 128 lanes or the full spatial extent"
    nb = B // tb
    npx = HW // tp

    _ts, noise, context_mask = _sample_randomness(key, x_nchw.shape, n_T, drop_prob)

    sa = sched["sqrtab"][_ts].astype(jnp.float32).reshape(B, 1, 1)      # (B,1,1)
    sm = sched["sqrtmab"][_ts].astype(jnp.float32).reshape(B, 1, 1)     # (B,1,1)
    t_norm = _ts.astype(jnp.float32) / n_T                              # (B,)

    # Conditioning folded into a tiny per-batch first-layer bias (B, Hd, 1):
    #   bias1[b] = W1c^T c_masked[b] + t_norm[b]*w1t + b1
    c_masked = c * (1.0 - context_mask)[:, None]                        # (B, n_classes)
    bias1 = (c_masked @ params["w1c"]
             + t_norm[:, None] * params["w1t"][None, :]
             + params["b1"][None, :]).astype(jnp.float32)[:, :, None]   # (B, Hd, 1)

    # Free reshapes (no transpose copies): channels stay on sublanes, HW on lanes.
    x3 = x_nchw.reshape(B, C, HW)
    noise3 = noise.reshape(B, C, HW)
    # TODO(synk): on-chip noise (pltpu.prng_* + stateful_normal) would halve the
    # remaining HBM read traffic but breaks the bit-exact check vs jax.random.

    # --- VMEM budget (double-buffered inputs + per-iteration temps) ---------
    in_blocks = [(tb, C, tp), (tb, C, tp), (tb, 1, 1), (tb, 1, 1), (tb, Hd, 1),
                 (Hd, C), (C, Hd), (C, 1)]
    out_blocks = [(1, 1, 1, 1)]
    vmem_est = sum(2 * _padded_block_bytes(s) for s in in_blocks + out_blocks)
    vmem_est += (_padded_block_bytes((Hd, tp))           # h
                 + 3 * _padded_block_bytes((C, tp))      # x_t, eps, diff
                 + _padded_block_bytes((1, tp)))         # lane accumulator
    vmem_limit = int(min(max(2 * vmem_est, 32 << 20), 64 << 20))

    # --- advisory cost estimate ----------------------------------------------
    flops = B * HW * (4 * Hd * C + 6 * C + Hd)
    bytes_accessed = 4 * (2 * B * C * HW + B * (2 + Hd)
                          + 2 * Hd * C + C + nb * npx)
    cost = pl.CostEstimate(flops=flops, transcendentals=0,
                           bytes_accessed=bytes_accessed)

    partial_sse = pl.pallas_call(
        ddpm_loss_kernel,
        out_shape=jax.ShapeDtypeStruct((nb, npx, 1, 1), jnp.float32),
        grid=(nb, npx),
        in_specs=[
            pl.BlockSpec((tb, C, tp), lambda i, j: (i, 0, j)),    # x
            pl.BlockSpec((tb, C, tp), lambda i, j: (i, 0, j)),    # noise
            pl.BlockSpec((tb, 1, 1), lambda i, j: (i, 0, 0)),     # sqrtab[t]
            pl.BlockSpec((tb, 1, 1), lambda i, j: (i, 0, 0)),     # sqrtmab[t]
            pl.BlockSpec((tb, Hd, 1), lambda i, j: (i, 0, 0)),    # bias1 (conditioning)
            pl.BlockSpec((Hd, C), lambda i, j: (0, 0)),           # W1x (constant block)
            pl.BlockSpec((C, Hd), lambda i, j: (0, 0)),           # W2  (constant block)
            pl.BlockSpec((C, 1), lambda i, j: (0, 0)),            # b2  (constant block)
        ],
        out_specs=pl.BlockSpec((1, 1, 1, 1), lambda i, j: (i, j, 0, 0)),
        compiler_params=pltpu.CompilerParams(
            dimension_semantics=("parallel", "parallel"),
            vmem_limit_bytes=vmem_limit,
        ),
        cost_estimate=cost,
    )(x3, noise3, sa, sm, bias1, params["w1x"], params["w2"], params["b2"])

    # nn.MSELoss default reduction='mean'
    return jnp.sum(partial_sse) / (B * C * HW)


# -------------------------- pure-JAX reference path -------------------------
def ddpm_forward_ref(params, sched, x_nchw, c, key, n_T, drop_prob=0.1):
    B, C, H, W = x_nchw.shape
    _ts, noise, context_mask = _sample_randomness(key, x_nchw.shape, n_T, drop_prob)
    sa = sched["sqrtab"][_ts][:, None, None, None]
    sm = sched["sqrtmab"][_ts][:, None, None, None]
    x_t = sa * x_nchw + sm * noise
    t_norm = _ts.astype(jnp.float32) / n_T

    c_masked = c * (1.0 - context_mask)[:, None]
    bias1 = (c_masked @ params["w1c"]
             + t_norm[:, None] * params["w1t"][None, :]
             + params["b1"][None, :])                                    # (B, Hd)
    xf = x_t.reshape(B, C, H * W)
    h = jnp.maximum(jnp.einsum("hc,bcp->bhp", params["w1x"], xf) + bias1[:, :, None], 0.0)
    eps = jnp.einsum("ch,bhp->bcp", params["w2"], h) + params["b2"][None]
    eps = eps.reshape(B, C, H, W)
    return jnp.mean((noise - eps) ** 2)


# --------------------------------- params -----------------------------------
def init_params(key, C, n_classes, Hd):
    k1, k2, k3, k4, k5, k6 = jax.random.split(key, 6)
    s = 0.1
    return {
        "w1x": s * jax.random.normal(k1, (Hd, C), dtype=jnp.float32),
        "w1c": s * jax.random.normal(k2, (n_classes, Hd), dtype=jnp.float32),
        "w1t": s * jax.random.normal(k3, (Hd,), dtype=jnp.float32),
        "b1":  s * jax.random.normal(k4, (Hd,), dtype=jnp.float32),
        "w2":  s * jax.random.normal(k5, (C, Hd), dtype=jnp.float32),
        "b2":  s * jax.random.normal(k6, (C, 1), dtype=jnp.float32),
    }


if __name__ == "__main__":
    # small shapes consistent with DDPM.forward(x, c)
    B, C, H, W = 2, 4, 16, 16
    n_classes = 10
    Hd = 32
    n_T = 400
    betas = (1e-4, 0.02)
    drop_prob = 0.1

    root = jax.random.PRNGKey(0)
    k_x, k_c, k_fwd, k_params = jax.random.split(root, 4)

    x = jax.random.normal(k_x, (B, C, H, W), dtype=jnp.float32)
    c = jax.nn.one_hot(jax.random.randint(k_c, (B,), 0, n_classes), n_classes,
                       dtype=jnp.float32)

    params = init_params(k_params, C, n_classes, Hd)
    sched = ddpm_schedules(betas[0], betas[1], n_T)

    loss = jax.block_until_ready(
        ddpm_forward_pallas(params, sched, x, c, k_fwd, n_T, drop_prob))
    loss_ref = jax.block_until_ready(
        ddpm_forward_ref(params, sched, x, c, k_fwd, n_T, drop_prob))

    assert jnp.isfinite(loss), "loss is not finite"
    assert jnp.allclose(loss, loss_ref, rtol=5e-2, atol=1e-3), (loss, loss_ref)
    # TODO(synk): nn_model is an injected dependency in the PyTorch module; a
    # synthetic conditioned per-pixel MLP is used here in its place.
    print("KERNEL_OK")
</pallas_src>

<mosaic_0001>
module attributes {stable_mosaic.version = 11 : i64} {
  func.func @ddpm_loss_kernel(%arg0: i32, %arg1: i32, %arg2: memref<2x4x256xf32, #tpu.memory_space<vmem>>, %arg3: memref<2x4x256xf32, #tpu.memory_space<vmem>>, %arg4: memref<2x1x1xf32, #tpu.memory_space<vmem>>, %arg5: memref<2x1x1xf32, #tpu.memory_space<vmem>>, %arg6: memref<2x32x1xf32, #tpu.memory_space<vmem>>, %arg7: memref<32x4xf32, #tpu.memory_space<vmem>>, %arg8: memref<4x32xf32, #tpu.memory_space<vmem>>, %arg9: memref<4x1xf32, #tpu.memory_space<vmem>>, %arg10: memref<1x1x1x1xf32, #tpu.memory_space<vmem>>) attributes {dimension_semantics = [#tpu.dimension_semantics<parallel>, #tpu.dimension_semantics<parallel>], iteration_bounds = array<i64: 1, 1>, scalar_prefetch = 0 : i64, scratch_operands = 0 : i64, tpu.core_type = #tpu.core_type<tc>, window_params = [{transform_indices = @transform_0, window_bounds = array<i64: 2, 4, 256>}, {transform_indices = @transform_1, window_bounds = array<i64: 2, 4, 256>}, {transform_indices = @transform_2, window_bounds = array<i64: 2, 1, 1>}, {transform_indices = @transform_3, window_bounds = array<i64: 2, 1, 1>}, {transform_indices = @transform_4, window_bounds = array<i64: 2, 32, 1>}, {pipeline_mode = #tpu.pipeline_mode<synchronous>, transform_indices = @transform_5, window_bounds = array<i64: 32, 4>}, {pipeline_mode = #tpu.pipeline_mode<synchronous>, transform_indices = @transform_6, window_bounds = array<i64: 4, 32>}, {pipeline_mode = #tpu.pipeline_mode<synchronous>, transform_indices = @transform_7, window_bounds = array<i64: 4, 1>}, {transform_indices = @transform_8, window_bounds = array<i64: 1, 1, 1, 1>}]} {
    %c0 = arith.constant 0 : index
    %c0_0 = arith.constant 0 : index
    %0 = vector.load %arg7[%c0, %c0_0] : memref<32x4xf32, #tpu.memory_space<vmem>>, vector<32x4xf32>
    %c0_1 = arith.constant 0 : index
    %c0_2 = arith.constant 0 : index
    %1 = vector.load %arg8[%c0_1, %c0_2] : memref<4x32xf32, #tpu.memory_space<vmem>>, vector<4x32xf32>
    %c0_3 = arith.constant 0 : index
    %c0_4 = arith.constant 0 : index
    %2 = vector.load %arg9[%c0_3, %c0_4] : memref<4x1xf32, #tpu.memory_space<vmem>>, vector<4x1xf32>
    %cst = arith.constant 0.000000e+00 : f32
    %3 = vector.broadcast %cst : f32 to vector<1x256xf32>
    %c0_i32 = arith.constant 0 : i32
    %4 = arith.index_cast %c0_i32 : i32 to index
    %c0_5 = arith.constant 0 : index
    %c0_6 = arith.constant 0 : index
    %5 = vector.load %arg2[%4, %c0_5, %c0_6] : memref<2x4x256xf32, #tpu.memory_space<vmem>>, vector<1x4x256xf32>
    %6 = vector.shape_cast %5 : vector<1x4x256xf32> to vector<4x256xf32>
    %7 = arith.index_cast %c0_i32 : i32 to index
    %c0_7 = arith.constant 0 : index
    %c0_8 = arith.constant 0 : index
    %8 = vector.load %arg3[%7, %c0_7, %c0_8] : memref<2x4x256xf32, #tpu.memory_space<vmem>>, vector<1x4x256xf32>
    %9 = vector.shape_cast %8 : vector<1x4x256xf32> to vector<4x256xf32>
    %10 = arith.index_cast %c0_i32 : i32 to index
    %c0_9 = arith.constant 0 : index
    %c0_10 = arith.constant 0 : index
    %11 = vector.load %arg4[%10, %c0_9, %c0_10] : memref<2x1x1xf32, #tpu.memory_space<vmem>>, vector<1x1x1xf32>
    %12 = vector.shape_cast %11 : vector<1x1x1xf32> to vector<1x1xf32>
    %13 = vector.broadcast %12 : vector<1x1xf32> to vector<4x256xf32>
    %14 = arith.mulf %13, %6 : vector<4x256xf32>
    %15 = arith.index_cast %c0_i32 : i32 to index
    %c0_11 = arith.constant 0 : index
    %c0_12 = arith.constant 0 : index
    %16 = vector.load %arg5[%15, %c0_11, %c0_12] : memref<2x1x1xf32, #tpu.memory_space<vmem>>, vector<1x1x1xf32>
    %17 = vector.shape_cast %16 : vector<1x1x1xf32> to vector<1x1xf32>
    %18 = vector.broadcast %17 : vector<1x1xf32> to vector<4x256xf32>
    %19 = arith.mulf %18, %9 : vector<4x256xf32>
    %20 = arith.addf %14, %19 : vector<4x256xf32>
    %cst_13 = arith.constant dense<0.000000e+00> : vector<32x256xf32>
    %21 = tpu.matmul %0, %20, %cst_13 {dimension_numbers = #tpu.dot_dimension_numbers<[1], [0], [0], [1], [0, 0, 1, 1], [], []>} : vector<32x4xf32>, vector<4x256xf32>, vector<32x256xf32> -> vector<32x256xf32>
    %22 = arith.index_cast %c0_i32 : i32 to index
    %c0_14 = arith.constant 0 : index
    %c0_15 = arith.constant 0 : index
    %23 = vector.load %arg6[%22, %c0_14, %c0_15] : memref<2x32x1xf32, #tpu.memory_space<vmem>>, vector<1x32x1xf32>
    %24 = vector.shape_cast %23 : vector<1x32x1xf32> to vector<32x1xf32>
    %25 = vector.broadcast %24 : vector<32x1xf32> to vector<32x256xf32>
    %26 = arith.addf %21, %25 : vector<32x256xf32>
    %cst_16 = arith.constant 0.000000e+00 : f32
    %27 = vector.broadcast %cst_16 : f32 to vector<32x256xf32>
    %28 = arith.maximumf %26, %27 : vector<32x256xf32>
    %cst_17 = arith.constant dense<0.000000e+00> : vector<4x256xf32>
    %29 = tpu.matmul %1, %28, %cst_17 {dimension_numbers = #tpu.dot_dimension_numbers<[1], [0], [0], [1], [0, 0, 1, 1], [], []>} : vector<4x32xf32>, vector<32x256xf32>, vector<4x256xf32> -> vector<4x256xf32>
    %30 = vector.broadcast %2 : vector<4x1xf32> to vector<4x256xf32>
    %31 = arith.addf %29, %30 : vector<4x256xf32>
    %32 = arith.subf %9, %31 : vector<4x256xf32>
    %33 = arith.mulf %32, %32 : vector<4x256xf32>
    %cst_18 = arith.constant dense<0.000000e+00> : vector<256xf32>
    %34 = vector.multi_reduction <add>, %33, %cst_18 [0] : vector<4x256xf32> to vector<256xf32>
    %35 = vector.shape_cast %34 : vector<256xf32> to vector<1x256xf32>
    %36 = arith.addf %3, %35 : vector<1x256xf32>
    %c1_i32 = arith.constant 1 : i32
    %37 = arith.index_cast %c1_i32 : i32 to index
    %c0_19 = arith.constant 0 : index
    %c0_20 = arith.constant 0 : index
    %38 = vector.load %arg2[%37, %c0_19, %c0_20] : memref<2x4x256xf32, #tpu.memory_space<vmem>>, vector<1x4x256xf32>
    %39 = vector.shape_cast %38 : vector<1x4x256xf32> to vector<4x256xf32>
    %40 = arith.index_cast %c1_i32 : i32 to index
    %c0_21 = arith.constant 0 : index
    %c0_22 = arith.constant 0 : index
    %41 = vector.load %arg3[%40, %c0_21, %c0_22] : memref<2x4x256xf32, #tpu.memory_space<vmem>>, vector<1x4x256xf32>
    %42 = vector.shape_cast %41 : vector<1x4x256xf32> to vector<4x256xf32>
    %43 = arith.index_cast %c1_i32 : i32 to index
    %c0_23 = arith.constant 0 : index
    %c0_24 = arith.constant 0 : index
    %44 = vector.load %arg4[%43, %c0_23, %c0_24] : memref<2x1x1xf32, #tpu.memory_space<vmem>>, vector<1x1x1xf32>
    %45 = vector.shape_cast %44 : vector<1x1x1xf32> to vector<1x1xf32>
    %46 = vector.broadcast %45 : vector<1x1xf32> to vector<4x256xf32>
    %47 = arith.mulf %46, %39 : vector<4x256xf32>
    %48 = arith.index_cast %c1_i32 : i32 to index
    %c0_25 = arith.constant 0 : index
    %c0_26 = arith.constant 0 : index
    %49 = vector.load %arg5[%48, %c0_25, %c0_26] : memref<2x1x1xf32, #tpu.memory_space<vmem>>, vector<1x1x1xf32>
    %50 = vector.shape_cast %49 : vector<1x1x1xf32> to vector<1x1xf32>
    %51 = vector.broadcast %50 : vector<1x1xf32> to vector<4x256xf32>
    %52 = arith.mulf %51, %42 : vector<4x256xf32>
    %53 = arith.addf %47, %52 : vector<4x256xf32>
    %cst_27 = arith.constant dense<0.000000e+00> : vector<32x256xf32>
    %54 = tpu.matmul %0, %53, %cst_27 {dimension_numbers = #tpu.dot_dimension_numbers<[1], [0], [0], [1], [0, 0, 1, 1], [], []>} : vector<32x4xf32>, vector<4x256xf32>, vector<32x256xf32> -> vector<32x256xf32>
    %55 = arith.index_cast %c1_i32 : i32 to index
    %c0_28 = arith.constant 0 : index
    %c0_29 = arith.constant 0 : index
    %56 = vector.load %arg6[%55, %c0_28, %c0_29] : memref<2x32x1xf32, #tpu.memory_space<vmem>>, vector<1x32x1xf32>
    %57 = vector.shape_cast %56 : vector<1x32x1xf32> to vector<32x1xf32>
    %58 = vector.broadcast %57 : vector<32x1xf32> to vector<32x256xf32>
    %59 = arith.addf %54, %58 : vector<32x256xf32>
    %cst_30 = arith.constant 0.000000e+00 : f32
    %60 = vector.broadcast %cst_30 : f32 to vector<32x256xf32>
    %61 = arith.maximumf %59, %60 : vector<32x256xf32>
    %cst_31 = arith.constant dense<0.000000e+00> : vector<4x256xf32>
    %62 = tpu.matmul %1, %61, %cst_31 {dimension_numbers = #tpu.dot_dimension_numbers<[1], [0], [0], [1], [0, 0, 1, 1], [], []>} : vector<4x32xf32>, vector<32x256xf32>, vector<4x256xf32> -> vector<4x256xf32>
    %63 = vector.broadcast %2 : vector<4x1xf32> to vector<4x256xf32>
    %64 = arith.addf %62, %63 : vector<4x256xf32>
    %65 = arith.subf %42, %64 : vector<4x256xf32>
    %66 = arith.mulf %65, %65 : vector<4x256xf32>
    %cst_32 = arith.constant dense<0.000000e+00> : vector<256xf32>
    %67 = vector.multi_reduction <add>, %66, %cst_32 [0] : vector<4x256xf32> to vector<256xf32>
    %68 = vector.shape_cast %67 : vector<256xf32> to vector<1x256xf32>
    %69 = arith.addf %36, %68 : vector<1x256xf32>
    %c2_i32 = arith.constant 2 : i32
    %70 = vector.shape_cast %69 : vector<1x256xf32> to vector<1x1x256xf32>
    %cst_33 = arith.constant dense<0.000000e+00> : vector<1xf32>
    %71 = vector.multi_reduction <add>, %70, %cst_33 [1, 2] : vector<1x1x256xf32> to vector<1xf32>
    %72 = vector.shape_cast %71 : vector<1xf32> to vector<1x1x1xf32>
    %73 = vector.extract %72[0, 0, 0] : f32 from vector<1x1x1xf32>
    %74 = vector.broadcast %73 : f32 to vector<1x1x1x1xf32>
    %c0_34 = arith.constant 0 : index
    %c0_35 = arith.constant 0 : index
    %c0_36 = arith.constant 0 : index
    %c0_37 = arith.constant 0 : index
    %75 = vector.load %arg10[%c0_34, %c0_35, %c0_36, %c0_37] : memref<1x1x1x1xf32, #tpu.memory_space<vmem>>, vector<1x1x1x1xf32>
    tpu.vector_store %arg10[%c0_34, %c0_35, %c0_36, %c0_37], %74 {strides = array<i32>} : memref<1x1x1x1xf32, #tpu.memory_space<vmem>>, vector<1x1x1x1xf32>,
    return
  }
  func.func @transform_0(%arg0: i32, %arg1: i32) -> (i32, i32, i32) {
    %c0_i32 = arith.constant 0 : i32
    %c0_i32_0 = arith.constant 0 : i32
    return %arg0, %c0_i32, %arg1 : i32, i32, i32
  }
  func.func @transform_1(%arg0: i32, %arg1: i32) -> (i32, i32, i32) {
    %c0_i32 = arith.constant 0 : i32
    %c0_i32_0 = arith.constant 0 : i32
    return %arg0, %c0_i32, %arg1 : i32, i32, i32
  }
  func.func @transform_2(%arg0: i32, %arg1: i32) -> (i32, i32, i32) {
    %c0_i32 = arith.constant 0 : i32
    %c0_i32_0 = arith.constant 0 : i32
    %c0_i32_1 = arith.constant 0 : i32
    return %arg0, %c0_i32, %c0_i32_0 : i32, i32, i32
  }
  func.func @transform_3(%arg0: i32, %arg1: i32) -> (i32, i32, i32) {
    %c0_i32 = arith.constant 0 : i32
    %c0_i32_0 = arith.constant 0 : i32
    %c0_i32_1 = arith.constant 0 : i32
    return %arg0, %c0_i32, %c0_i32_0 : i32, i32, i32
  }
  func.func @transform_4(%arg0: i32, %arg1: i32) -> (i32, i32, i32) {
    %c0_i32 = arith.constant 0 : i32
    %c0_i32_0 = arith.constant 0 : i32
    %c0_i32_1 = arith.constant 0 : i32
    return %arg0, %c0_i32, %c0_i32_0 : i32, i32, i32
  }
  func.func @transform_5(%arg0: i32, %arg1: i32) -> (i32, i32) {
    %c0_i32 = arith.constant 0 : i32
    %c0_i32_0 = arith.constant 0 : i32
    %c0_i32_1 = arith.constant 0 : i32
    return %c0_i32, %c0_i32_0 : i32, i32
  }
  func.func @transform_6(%arg0: i32, %arg1: i32) -> (i32, i32) {
    %c0_i32 = arith.constant 0 : i32
    %c0_i32_0 = arith.constant 0 : i32
    %c0_i32_1 = arith.constant 0 : i32
    return %c0_i32, %c0_i32_0 : i32, i32
  }
  func.func @transform_7(%arg0: i32, %arg1: i32) -> (i32, i32) {
    %c0_i32 = arith.constant 0 : i32
    %c0_i32_0 = arith.constant 0 : i32
    %c0_i32_1 = arith.constant 0 : i32
    return %c0_i32, %c0_i32_0 : i32, i32
  }
  func.func @transform_8(%arg0: i32, %arg1: i32) -> (i32, i32, i32, i32) {
    %c0_i32 = arith.constant 0 : i32
    %c0_i32_0 = arith.constant 0 : i32
    %c0_i32_1 = arith.constant 0 : i32
    return %arg0, %arg1, %c0_i32, %c0_i32_0 : i32, i32, i32, i32
  }
}

</mosaic_0001>

<llo_original>
// kernel: tpu_custom_call.1
$region0: #{tpu_custom_call.1}
  #allocation0 [shape = 'u32[]', space=smem, size = 0x4, offset = 0x4, fixed_abs, tag = 'smem constant byte address 0x4 - core index']
  #allocation1 [shape = 'u32[72,128]{1,0:T(1,128)}', space=vmem, size = 0x9000, scoped, tag = 'internal scratch']
  %s0 = inlined_call_operand.vmem [shape: f32[2,4,256], index: 0, kind: input, shape index: {}]
  %s1 = inlined_call_operand.vmem [shape: f32[2,4,256], index: 1, kind: input, shape index: {}]
  %s2 = inlined_call_operand.vmem [shape: f32[2,1,1], index: 2, kind: input, shape index: {}]
  %s3 = inlined_call_operand.vmem [shape: f32[2,1,1], index: 3, kind: input, shape index: {}]
  %s4 = inlined_call_operand.vmem [shape: f32[2,32,1], index: 4, kind: input, shape index: {}]
  %s5 = inlined_call_operand.vmem [shape: f32[32,4], index: 5, kind: input, shape index: {}]
  %s6 = inlined_call_operand.vmem [shape: f32[4,32], index: 6, kind: input, shape index: {}]
  %s7 = inlined_call_operand.vmem [shape: f32[4,1], index: 7, kind: input, shape index: {}]
  %s8 = inlined_call_operand.hbm [shape: f32[1,1,1,1], index: 8, kind: output, shape index: {}]
  %s9 = sld [smem:[#allocation0]]
  $region42: #{tpu_custom_call.1} parent=0
    _
  %s11 = ssub.s32 1, %s9
  %s12 = scalar_select 0, %s11, %s9
  $region1: #{tpu_custom_call.1} parent=0
    #allocation2 [shape = 'u8[512]{0}', space=vmem, size = 0x400, scoped, tag = 'output window, operand 0, single buffered']
    #allocation3 [shape = 's32[1]{0}', space=sflag, size = 0x4, scoped, tag = 'scoped memory for tpu_custom_call.1']
    %13 = vsyncpa [#allocation3], 0
    // Predicated region
    $region2: #{tpu_custom_call.1} parent=1 // pred_check
      _
    $region3: #{tpu_custom_call.1} parent=1 // pred_check_branch
      %15 = sbr.rel (0) target = $region5
    $region4: #{tpu_custom_call.1} parent=1 // pred_region
      _
    $region5: #{tpu_custom_call.1} parent=1 // pred_fallthru
      _
    // Predicated region
    $region6: #{tpu_custom_call.1} parent=1 // pred_check
      _
    $region7: #{tpu_custom_call.1} parent=1 // pred_check_branch
      %17 = sbr.rel (0) target = $region9
    $region8: #{tpu_custom_call.1} parent=1 // pred_region
      _
    $region9: #{tpu_custom_call.1} parent=1 // pred_fallthru
      _
    // Predicated region
    $region10: #{tpu_custom_call.1} parent=1 // pred_check
      _
    $region11: #{tpu_custom_call.1} parent=1 // pred_check_branch
      %19 = sbr.rel (0) target = $region13
    $region12: #{tpu_custom_call.1} parent=1 // pred_region
      _
    $region13: #{tpu_custom_call.1} parent=1 // pred_fallthru
      _
    // Predicated region
    $region14: #{tpu_custom_call.1} parent=1 // pred_check
      _
    $region15: #{tpu_custom_call.1} parent=1 // pred_check_branch
      %21 = sbr.rel (0) target = $region17
    $region16: #{tpu_custom_call.1} parent=1 // pred_region
      _
    $region17: #{tpu_custom_call.1} parent=1 // pred_fallthru
      _
    // Predicated region
    $region18: #{tpu_custom_call.1} parent=1 // pred_check
      _
    $region19: #{tpu_custom_call.1} parent=1 // pred_check_branch
      %23 = sbr.rel (0) target = $region21
    $region20: #{tpu_custom_call.1} parent=1 // pred_region
      _
    $region21: #{tpu_custom_call.1} parent=1 // pred_fallthru
      _
    // Predicated region
    $region22: #{tpu_custom_call.1} parent=1 // pred_check
      _
    $region23: #{tpu_custom_call.1} parent=1 // pred_check_branch
      %25 = sbr.rel (0) target = $region25
    $region24: #{tpu_custom_call.1} parent=1 // pred_region
      _
    $region25: #{tpu_custom_call.1} parent=1 // pred_fallthru
      _
    // Predicated region
    $region26: #{tpu_custom_call.1} parent=1 // pred_check
      _
    $region27: #{tpu_custom_call.1} parent=1 // pred_check_branch
      %27 = sbr.rel (0) target = $region29
    $region28: #{tpu_custom_call.1} parent=1 // pred_region
      _
    $region29: #{tpu_custom_call.1} parent=1 // pred_fallthru
      _
    // Predicated region
    $region30: #{tpu_custom_call.1} parent=1 // pred_check
      _
    $region31: #{tpu_custom_call.1} parent=1 // pred_check_branch
      %29 = sbr.rel (0) target = $region33
    $region32: #{tpu_custom_call.1} parent=1 // pred_region
      _
    $region33: #{tpu_custom_call.1} parent=1 // pred_fallthru
      _
    %v30 = vld [vmem:[%s5] sm:$0xff]
    %v31 = vld [vmem:[%s5 + $0x8] sm:$0xff]
    %v32 = vld [vmem:[%s5 + $0x10] sm:$0xff]
    %v33 = vld [vmem:[%s5 + $0x18] sm:$0xff]
    %v34 = vld [vmem:[%s6] sm:$0xf]
    %v35 = vld [vmem:[%s7] sm:$0xf]
    %v36 = vld [vmem:[%s0] sm:$0xff]
    %v37 = vld [vmem:[%s1] sm:$0xff]
    %v38 = vld [vmem:[%s2] sm:$0x1]
    %v40 = vperm.slane %v38, 0
    %41 = vset.pattern.permute.xlu0 0
    %42 = vperm.xlu0 %41, %v40
    %v43 = vpop.permute.xlu0 %42
    %v45 = vmul.f32 %v43, %v36
    %v46 = vld [vmem:[%s3] sm:$0x1]
    %v48 = vperm.slane %v46, 0
    %49 = vset.pattern.permute.xlu0 0
    %50 = vperm.xlu0 %49, %v48
    %v51 = vpop.permute.xlu0 %50
    %v53 = vmul.f32 %v51, %v37
    %v54 = vadd.f32 %v45, %v53
    %v55 = vld [vmem:[%s4] sm:$0xff]
    %v56 = vld [vmem:[%s4 + $0x8] sm:$0xff]
    %v57 = vld [vmem:[%s4 + $0x10] sm:$0xff]
    %v58 = vld [vmem:[%s4 + $0x18] sm:$0xff]
    %60 = vset.pattern.permute.xlu0 0
    %61 = vperm.xlu0 %60, %v55
    %v62 = vpop.permute.xlu0 %61
    %65 = vset.pattern.permute.xlu0 0
    %66 = vperm.xlu0 %65, %v56
    %v67 = vpop.permute.xlu0 %66
    %70 = vset.pattern.permute.xlu0 0
    %71 = vperm.xlu0 %70, %v57
    %v72 = vpop.permute.xlu0 %71
    %75 = vset.pattern.permute.xlu0 0
    %76 = vperm.xlu0 %75, %v58
    %v77 = vpop.permute.xlu0 %76
    %80 = vst [vmem:[#allocation1] ss:$2 sm:$0xff] %v54
    %v81 = vld.sshfl [vmem:[#allocation1] sm:$0xff pattern:$0x75316420]
    %v82 = vld.sshfl [vmem:[#allocation1 + $0x8] sm:$0xff pattern:$0x75316420]
    %vm83 = vcmask 31744
    %v85 = vsel %vm83, %v30, 0
    %v88 = vsel %vm83, %v31, 0
    %v91 = vsel %vm83, %v32, 0
    %v94 = vsel %vm83, %v33, 0
    %vm96 = vcmask 1043456
    %v97 = vsel %vm96, %v81, 0
    %v99 = vsel %vm96, %v82, 0
    %101 = vmatpush.msra.mxu0 0.0
    %102 = vmatpush.msra.mxu0 0.0
    %103 = vmatpush.msra.mxu0 0.0
    %104 = vmatpush.msra.mxu0 0.0
    %105 = vmatpush.msra.mxu0 0.0
    %106 = vmatpush.msra.mxu0 0.0
    %107 = vmatpush.msra.mxu0 0.0
    %108 = vmatpush.msra.mxu0 0.0
    %109 = vmatpush.msra.mxu0 0.0
    %110 = vmatpush.msra.mxu0 0.0
    %111 = vmatpush.msra.mxu0 0.0
    %112 = vmatpush.msra.mxu0 0.0
    %113 = vmatpush.msra.mxu0 0.0
    %114 = vmatpush.msra.mxu0 0.0
    %115 = vmatpush.msra.mxu0 0.0
    %116 = vmatpush.msra.mxu0 %v97
    %117 = vmatmul.f32.gmra.mxu0 %v85
    %v118 = vpop.f32.mrf.mxu0
    %v119 = vadd.f32 %v62, %v118
    %120 = vmatmul.f32.gmra.mxu0 %v88
    %v121 = vpop.f32.mrf.mxu0
    %v122 = vadd.f32 %v67, %v121
    %123 = vmatmul.f32.gmra.mxu0 %v91
    %v124 = vpop.f32.mrf.mxu0
    %v125 = vadd.f32 %v72, %v124
    %126 = vmatmul.f32.gmra.mxu0 %v94
    %v127 = vpop.f32.mrf.mxu0
    %v128 = vadd.f32 %v77, %v127
    %129 = vdwg.mxu0
    %130 = vmatpush.msra.mxu0 0.0
    %131 = vmatpush.msra.mxu0 0.0
    %132 = vmatpush.msra.mxu0 0.0
    %133 = vmatpush.msra.mxu0 0.0
    %134 = vmatpush.msra.mxu0 0.0
    %135 = vmatpush.msra.mxu0 0.0
    %136 = vmatpush.msra.mxu0 0.0
    %137 = vmatpush.msra.mxu0 0.0
    %138 = vmatpush.msra.mxu0 0.0
    %139 = vmatpush.msra.mxu0 0.0
    %140 = vmatpush.msra.mxu0 0.0
    %141 = vmatpush.msra.mxu0 0.0
    %142 = vmatpush.msra.mxu0 0.0
    %143 = vmatpush.msra.mxu0 0.0
    %144 = vmatpush.msra.mxu0 0.0
    %145 = vmatpush.msra.mxu0 %v99
    %146 = vmatmul.f32.gmra.mxu0 %v85
    %v147 = vpop.f32.mrf.mxu0
    %v148 = vadd.f32 %v62, %v147
    %149 = vmatmul.f32.gmra.mxu0 %v88
    %v150 = vpop.f32.mrf.mxu0
    %v151 = vadd.f32 %v67, %v150
    %152 = vmatmul.f32.gmra.mxu0 %v91
    %v153 = vpop.f32.mrf.mxu0
    %v154 = vadd.f32 %v72, %v153
    %155 = vmatmul.f32.gmra.mxu0 %v94
    %v156 = vpop.f32.mrf.mxu0
    %v157 = vadd.f32 %v77, %v156
    %158 = vdwg.mxu0
    %v159 = vmax.f32 %v119, 0.0
    %v160 = vmax.f32 %v148, 0.0
    %v161 = vmax.f32 %v122, 0.0
    %v162 = vmax.f32 %v151, 0.0
    %v163 = vmax.f32 %v125, 0.0
    %v164 = vmax.f32 %v154, 0.0
    %v165 = vmax.f32 %v128, 0.0
    %v166 = vmax.f32 %v157, 0.0
    %168 = vset.pattern.permute.xlu0 0
    %169 = vperm.xlu0 %168, %v35
    %v170 = vpop.permute.xlu0 %169
    %vm172 = vcmask 261120
    %v174 = vsel %vm172, %v34, 0
    %176 = vmatpush.msra.mxu0 0.0
    %177 = vmatpush.msra.mxu0 0.0
    %178 = vmatpush.msra.mxu0 0.0
    %179 = vmatpush.msra.mxu0 0.0
    %180 = vmatpush.msra.mxu0 0.0
    %181 = vmatpush.msra.mxu0 0.0
    %182 = vmatpush.msra.mxu0 0.0
    %183 = vmatpush.msra.mxu0 0.0
    %184 = vmatpush.msra.mxu0 0.0
    %185 = vmatpush.msra.mxu0 0.0
    %186 = vmatpush.msra.mxu0 0.0
    %187 = vmatpush.msra.mxu0 0.0
    %188 = vmatpush.msra.mxu0 %v165
    %189 = vmatpush.msra.mxu0 %v163
    %190 = vmatpush.msra.mxu0 %v161
    %191 = vmatpush.msra.mxu0 %v159
    %192 = vmatmul.f32.gmra.mxu0 %v174
    %v193 = vpop.f32.mrf.mxu0
    %v194 = vadd.f32 %v170, %v193
    %195 = vdwg.mxu0
    %196 = vmatpush.msra.mxu0 0.0
    %197 = vmatpush.msra.mxu0 0.0
    %198 = vmatpush.msra.mxu0 0.0
    %199 = vmatpush.msra.mxu0 0.0
    %200 = vmatpush.msra.mxu0 0.0
    %201 = vmatpush.msra.mxu0 0.0
    %202 = vmatpush.msra.mxu0 0.0
    %203 = vmatpush.msra.mxu0 0.0
    %204 = vmatpush.msra.mxu0 0.0
    %205 = vmatpush.msra.mxu0 0.0
    %206 = vmatpush.msra.mxu0 0.0
    %207 = vmatpush.msra.mxu0 0.0
    %208 = vmatpush.msra.mxu0 %v166
    %209 = vmatpush.msra.mxu0 %v164
    %210 = vmatpush.msra.mxu0 %v162
    %211 = vmatpush.msra.mxu0 %v160
    %212 = vmatmul.f32.gmra.mxu0 %v174
    %v213 = vpop.f32.mrf.mxu0
    %v214 = vadd.f32 %v170, %v213
    %215 = vdwg.mxu0
    %v218 = vrot.slane %v214, 4
    %v219 = vsel %vm96, %v194, %v218
    %v221 = vsub.f32 %v37, %v219
    %v222 = vmul.f32 %v221, %v221
    %224 = vst [vmem:[#allocation1] ss:$2 sm:$0xff] %v222
    %v225 = vld.sshfl [vmem:[#allocation1] sm:$0xff pattern:$0x75316420]
    %v226 = vld.sshfl [vmem:[#allocation1 + $0x8] sm:$0xff pattern:$0x75316420]
    %v229 = vsel %vm96, %v225, 0.0
    %v230 = vrot.slane %v229, 4
    %v231 = vadd.f32 %v229, %v230
    %v232 = vrot.slane %v231, 2
    %v233 = vadd.f32 %v231, %v232
    %v234 = vrot.slane %v233, 1
    %v235 = vadd.f32 %v233, %v234
    %v236 = vsel %vm96, %v226, 0.0
    %v237 = vrot.slane %v236, 4
    %v238 = vadd.f32 %v236, %v237
    %v239 = vrot.slane %v238, 2
    %v240 = vadd.f32 %v238, %v239
    %v241 = vrot.slane %v240, 1
    %v242 = vadd.f32 %v240, %v241
    %v243 = vadd.f32 %v235, 0.0
    %v244 = vadd.f32 %v242, 0.0
    %s245 = scalar_lea.vmem %s0, 8
    %v246 = vld [vmem:[%s245] sm:$0xff]
    %s247 = scalar_lea.vmem %s1, 8
    %v248 = vld [vmem:[%s247] sm:$0xff]
    %s249 = scalar_lea.vmem %s2, 1
    %v250 = vld [vmem:[%s249] sm:$0x1]
    %v252 = vperm.slane %v250, 0
    %253 = vset.pattern.permute.xlu0 0
    %254 = vperm.xlu0 %253, %v252
    %v255 = vpop.permute.xlu0 %254
    %v257 = vmul.f32 %v255, %v246
    %s258 = scalar_lea.vmem %s3, 1
    %v259 = vld [vmem:[%s258] sm:$0x1]
    %v261 = vperm.slane %v259, 0
    %262 = vset.pattern.permute.xlu0 0
    %263 = vperm.xlu0 %262, %v261
    %v264 = vpop.permute.xlu0 %263
    %v266 = vmul.f32 %v264, %v248
    %v267 = vadd.f32 %v257, %v266
    %s268 = scalar_lea.vmem %s4, 32
    %v269 = vld [vmem:[%s268] sm:$0xff]
    %v270 = vld [vmem:[%s268 + $0x8] sm:$0xff]
    %v271 = vld [vmem:[%s268 + $0x10] sm:$0xff]
    %v272 = vld [vmem:[%s268 + $0x18] sm:$0xff]
    %274 = vset.pattern.permute.xlu0 0
    %275 = vperm.xlu0 %274, %v269
    %v276 = vpop.permute.xlu0 %275
    %279 = vset.pattern.permute.xlu0 0
    %280 = vperm.xlu0 %279, %v270
    %v281 = vpop.permute.xlu0 %280
    %284 = vset.pattern.permute.xlu0 0
    %285 = vperm.xlu0 %284, %v271
    %v286 = vpop.permute.xlu0 %285
    %289 = vset.pattern.permute.xlu0 0
    %290 = vperm.xlu0 %289, %v272
    %v291 = vpop.permute.xlu0 %290
    %294 = vst [vmem:[#allocation1] ss:$2 sm:$0xff] %v267
    %v295 = vld.sshfl [vmem:[#allocation1] sm:$0xff pattern:$0x75316420]
    %v296 = vld.sshfl [vmem:[#allocation1 + $0x8] sm:$0xff pattern:$0x75316420]
    %v297 = vsel %vm96, %v295, 0
    %v299 = vsel %vm96, %v296, 0
    %301 = vmatpush.msra.mxu0 0.0
    %302 = vmatpush.msra.mxu0 0.0
    %303 = vmatpush.msra.mxu0 0.0
    %304 = vmatpush.msra.mxu0 0.0
    %305 = vmatpush.msra.mxu0 0.0
    %306 = vmatpush.msra.mxu0 0.0
    %307 = vmatpush.msra.mxu0 0.0
    %308 = vmatpush.msra.mxu0 0.0
    %309 = vmatpush.msra.mxu0 0.0
    %310 = vmatpush.msra.mxu0 0.0
    %311 = vmatpush.msra.mxu0 0.0
    %312 = vmatpush.msra.mxu0 0.0
    %313 = vmatpush.msra.mxu0 0.0
    %314 = vmatpush.msra.mxu0 0.0
    %315 = vmatpush.msra.mxu0 0.0
    %316 = vmatpush.msra.mxu0 %v297
    %317 = vmatmul.f32.gmra.mxu0 %v85
    %v318 = vpop.f32.mrf.mxu0
    %v319 = vadd.f32 %v276, %v318
    %320 = vmatmul.f32.gmra.mxu0 %v88
    %v321 = vpop.f32.mrf.mxu0
    %v322 = vadd.f32 %v281, %v321
    %323 = vmatmul.f32.gmra.mxu0 %v91
    %v324 = vpop.f32.mrf.mxu0
    %v325 = vadd.f32 %v286, %v324
    %326 = vmatmul.f32.gmra.mxu0 %v94
    %v327 = vpop.f32.mrf.mxu0
    %v328 = vadd.f32 %v291, %v327
    %329 = vdwg.mxu0
    %330 = vmatpush.msra.mxu0 0.0
    %331 = vmatpush.msra.mxu0 0.0
    %332 = vmatpush.msra.mxu0 0.0
    %333 = vmatpush.msra.mxu0 0.0
    %334 = vmatpush.msra.mxu0 0.0
    %335 = vmatpush.msra.mxu0 0.0
    %336 = vmatpush.msra.mxu0 0.0
    %337 = vmatpush.msra.mxu0 0.0
    %338 = vmatpush.msra.mxu0 0.0
    %339 = vmatpush.msra.mxu0 0.0
    %340 = vmatpush.msra.mxu0 0.0
    %341 = vmatpush.msra.mxu0 0.0
    %342 = vmatpush.msra.mxu0 0.0
    %343 = vmatpush.msra.mxu0 0.0
    %344 = vmatpush.msra.mxu0 0.0
    %345 = vmatpush.msra.mxu0 %v299
    %346 = vmatmul.f32.gmra.mxu0 %v85
    %v347 = vpop.f32.mrf.mxu0
    %v348 = vadd.f32 %v276, %v347
    %349 = vmatmul.f32.gmra.mxu0 %v88
    %v350 = vpop.f32.mrf.mxu0
    %v351 = vadd.f32 %v281, %v350
    %352 = vmatmul.f32.gmra.mxu0 %v91
    %v353 = vpop.f32.mrf.mxu0
    %v354 = vadd.f32 %v286, %v353
    %355 = vmatmul.f32.gmra.mxu0 %v94
    %v356 = vpop.f32.mrf.mxu0
    %v357 = vadd.f32 %v291, %v356
    %358 = vdwg.mxu0
    %v359 = vmax.f32 %v319, 0.0
    %v360 = vmax.f32 %v348, 0.0
    %v361 = vmax.f32 %v322, 0.0
    %v362 = vmax.f32 %v351, 0.0
    %v363 = vmax.f32 %v325, 0.0
    %v364 = vmax.f32 %v354, 0.0
    %v365 = vmax.f32 %v328, 0.0
    %v366 = vmax.f32 %v357, 0.0
    %367 = vmatpush.msra.mxu0 0.0
    %368 = vmatpush.msra.mxu0 0.0
    %369 = vmatpush.msra.mxu0 0.0
    %370 = vmatpush.msra.mxu0 0.0
    %371 = vmatpush.msra.mxu0 0.0
    %372 = vmatpush.msra.mxu0 0.0
    %373 = vmatpush.msra.mxu0 0.0
    %374 = vmatpush.msra.mxu0 0.0
    %375 = vmatpush.msra.mxu0 0.0
    %376 = vmatpush.msra.mxu0 0.0
    %377 = vmatpush.msra.mxu0 0.0
    %378 = vmatpush.msra.mxu0 0.0
    %379 = vmatpush.msra.mxu0 %v365
    %380 = vmatpush.msra.mxu0 %v363
    %381 = vmatpush.msra.mxu0 %v361
    %382 = vmatpush.msra.mxu0 %v359
    %383 = vmatmul.f32.gmra.mxu0 %v174
    %v384 = vpop.f32.mrf.mxu0
    %v385 = vadd.f32 %v170, %v384
    %386 = vdwg.mxu0
    %387 = vmatpush.msra.mxu0 0.0
    %388 = vmatpush.msra.mxu0 0.0
    %389 = vmatpush.msra.mxu0 0.0
    %390 = vmatpush.msra.mxu0 0.0
    %391 = vmatpush.msra.mxu0 0.0
    %392 = vmatpush.msra.mxu0 0.0
    %393 = vmatpush.msra.mxu0 0.0
    %394 = vmatpush.msra.mxu0 0.0
    %395 = vmatpush.msra.mxu0 0.0
    %396 = vmatpush.msra.mxu0 0.0
    %397 = vmatpush.msra.mxu0 0.0
    %398 = vmatpush.msra.mxu0 0.0
    %399 = vmatpush.msra.mxu0 %v366
    %400 = vmatpush.msra.mxu0 %v364
    %401 = vmatpush.msra.mxu0 %v362
    %402 = vmatpush.msra.mxu0 %v360
    %403 = vmatmul.f32.gmra.mxu0 %v174
    %v404 = vpop.f32.mrf.mxu0
    %v405 = vadd.f32 %v170, %v404
    %406 = vdwg.mxu0
    %v409 = vrot.slane %v405, 4
    %v410 = vsel %vm96, %v385, %v409
    %v412 = vsub.f32 %v248, %v410
    %v413 = vmul.f32 %v412, %v412
    %415 = vst [vmem:[#allocation1] ss:$2 sm:$0xff] %v413
    %v416 = vld.sshfl [vmem:[#allocation1] sm:$0xff pattern:$0x75316420]
    %v417 = vld.sshfl [vmem:[#allocation1 + $0x8] sm:$0xff pattern:$0x75316420]
    %v420 = vsel %vm96, %v416, 0.0
    %v421 = vrot.slane %v420, 4
    %v422 = vadd.f32 %v420, %v421
    %v423 = vrot.slane %v422, 2
    %v424 = vadd.f32 %v422, %v423
    %v425 = vrot.slane %v424, 1
    %v426 = vadd.f32 %v424, %v425
    %v427 = vsel %vm96, %v417, 0.0
    %v428 = vrot.slane %v427, 4
    %v429 = vadd.f32 %v427, %v428
    %v430 = vrot.slane %v429, 2
    %v431 = vadd.f32 %v429, %v430
    %v432 = vrot.slane %v431, 1
    %v433 = vadd.f32 %v431, %v432
    %v434 = vadd.f32 %v243, %v426
    %v435 = vadd.f32 %v244, %v433
    %vm436 = vcmask 1040384
    %v437 = vsel %vm436, %v434, 0.0
    %v438 = vsel %vm436, %v435, 0.0
    %v439 = vadd.f32 %v437, %v438
    %440 = vadd.xlane.f32.xlu0 %v439
    %v441 = vpop.xlane.xlu0 %440
    %v442 = vrot.slane %v441, 4
    %v443 = vadd.f32 %v441, %v442
    %v444 = vrot.slane %v443, 2
    %v445 = vadd.f32 %v443, %v444
    %v446 = vrot.slane %v445, 1
    %v447 = vadd.f32 %v445, %v446
    %s448 = vtos %v447
    %v449 = vstv %s448
    %vm450 = vcmask 0
    %451 = vst.msk [vmem:[#allocation2] sm:$0x1] %vm450, %v449
    // Predicated region
    $region34: #{tpu_custom_call.1} parent=1 // pred_check
      _
    $region35: #{tpu_custom_call.1} parent=1 // pred_check_branch
      %453 = sbr.rel (0) target = $region37
    $region36: #{tpu_custom_call.1} parent=1 // pred_region
      %455 = vsyncadd [#allocation3], 0
      %s457 = sshll.u32 [#allocation2], 4
      %s458 = int_to_ptr.vmem [resolvable:$true] %s457
      %s459 = sshll.u32 %s8, 4
      %s460 = int_to_ptr.hbm [resolvable:$true] %s459
      %462 = dma.vmem_to_hbm [thread:$0]  %s458, 16, %s460, [#allocation3]
    $region37: #{tpu_custom_call.1} parent=1 // pred_fallthru
      _
    // Predicated region
    $region38: #{tpu_custom_call.1} parent=1 // pred_check
      _
    $region39: #{tpu_custom_call.1} parent=1 // pred_check_branch
      %464 = sbr.rel (0) target = $region41
    $region40: #{tpu_custom_call.1} parent=1 // pred_region
      %466 = dma.done [#allocation3], 16
    $region41: #{tpu_custom_call.1} parent=1 // pred_fallthru
      _
    %467 = vsyncpa [#allocation3], 1

</llo_original>
